<compile_context>
chip_gen: v6e
topology: v6e:2x2x1
jax: 0.10.0
libtpu: 0.0.40
codegen_flags: <defaults>
</compile_context>

<pallas_src>
import jax
import jax.numpy as jnp
from jax.experimental import pallas as pl
from jax.experimental.pallas import tpu as pltpu

_LANES = 128           # vreg lane width: last dim of the compute layout
_MAX_TILE_ROWS = 1024  # 1024x128 f32 = 512 KiB/buffer; x2 dbl-buf x2 (in+out) ~ 2 MiB VMEM


def _sublane_multiple(dtype) -> int:
    # Minimal second-minor tile multiple: 8 for 4-byte, 16 for 2-byte, 32 for 1-byte dtypes.
    return max(8, 32 // jnp.dtype(dtype).itemsize)


def _logreg_kernel(wb_ref, x_ref, o_ref):
    # wb_ref: SMEM f32[2] = [weight, bias] of Linear(1, 1).
    # x_ref / o_ref: (tile_rows, 128) lane-dense VMEM tiles of the flattened batch.
    w = wb_ref[0]
    b = wb_ref[1]
    z = x_ref[...].astype(jnp.float32) * w + b            # == x @ W^T + b for in=out=1
    # sigmoid(z) = 1 / (1 + exp(-z)); exp and approx reciprocal both run on the EUP.
    sig = pl.reciprocal(1.0 + jnp.exp(-z), approx=True)
    o_ref[...] = sig.astype(o_ref.dtype)


@jax.jit
def logreg_forward(x, weight, bias):
    """x: (B, 1); weight: (1, 1); bias: (1,)  ->  (B, 1) in x.dtype."""
    B = x.shape[0]
    in_dtype = x.dtype

    # Pack weight & bias into one tiny 1-D SMEM operand (one padded slab, not two).
    wb = jnp.concatenate(
        [jnp.reshape(weight, (-1,)), jnp.reshape(bias, (-1,))]
    ).astype(jnp.float32)

    # ---- wrapper-side layout plumbing: (B, 1) -> lane-dense (rows_padded, 128) ----
    sub = _sublane_multiple(in_dtype)
    rows = pl.cdiv(B, _LANES)
    rows = ((rows + sub - 1) // sub) * sub                         # satisfy (sub, 128) tiling
    tile_rows = min(_MAX_TILE_ROWS, rows)
    rows_padded = ((rows + tile_rows - 1) // tile_rows) * tile_rows
    n_pad = rows_padded * _LANES - B

    x_flat = jnp.reshape(x, (-1,))
    x2d = jnp.pad(x_flat, (0, n_pad)).reshape(rows_padded, _LANES)  # keep narrow dtype in HBM

    grid = (rows_padded // tile_rows,)
    out2d = pl.pallas_call(
        _logreg_kernel,
        out_shape=jax.ShapeDtypeStruct((rows_padded, _LANES), in_dtype),
        grid_spec=pltpu.PrefetchScalarGridSpec(
            num_scalar_prefetch=0,
            grid=grid,
            in_specs=[
                pl.BlockSpec(memory_space=pltpu.MemorySpace.SMEM),    # [w, b]
                pl.BlockSpec((tile_rows, _LANES), lambda i: (i, 0)),  # x tile
            ],
            out_specs=pl.BlockSpec((tile_rows, _LANES), lambda i: (i, 0)),
        ),
        compiler_params=pltpu.CompilerParams(
            dimension_semantics=("parallel",),  # batch tiles can shard across TCs (v7x)
        ),
    )(wb, x2d)

    # Drop padding and restore the module's (B, 1) output shape.
    return out2d.reshape(-1)[:B].reshape(B, 1)


if __name__ == "__main__":
    key = jax.random.PRNGKey(0)
    kx, kw, kb = jax.random.split(key, 3)

    # PyTorch Linear(1,1) init: U(-1/sqrt(in), 1/sqrt(in)) with in=1 -> U(-1, 1)
    weight = jax.random.uniform(kw, (1, 1), jnp.float32, minval=-1.0, maxval=1.0)
    bias = jax.random.uniform(kb, (1,), jnp.float32, minval=-1.0, maxval=1.0)

    B = 8
    x = jax.random.normal(kx, (B, 1), jnp.float32)

    out = jax.block_until_ready(logreg_forward(x, weight, bias))

    # Reference check in plain JAX (approx EUP reciprocal => slightly looser tolerance).
    ref = jax.nn.sigmoid(x @ weight.T + bias)
    assert out.shape == (B, 1)
    assert out.dtype == x.dtype
    assert jnp.allclose(out, ref, atol=2e-3, rtol=2e-3), float(jnp.max(jnp.abs(out - ref)))

    print("KERNEL_OK")
</pallas_src>

<mosaic_0001>
module attributes {stable_mosaic.version = 11 : i64} {
  func.func @_logreg_kernel(%arg0: i32, %arg1: memref<2xf32, #tpu.memory_space<smem>>, %arg2: memref<8x128xf32, #tpu.memory_space<vmem>>, %arg3: memref<8x128xf32, #tpu.memory_space<vmem>>) attributes {dimension_semantics = [#tpu.dimension_semantics<parallel>], iteration_bounds = array<i64: 1>, scalar_prefetch = 0 : i64, scratch_operands = 0 : i64, tpu.core_type = #tpu.core_type<tc>, window_params = [{transform_indices = @transform_0, window_bounds = array<i64: 2>}, {transform_indices = @transform_1, window_bounds = array<i64: 8, 128>}, {transform_indices = @transform_2, window_bounds = array<i64: 8, 128>}]} {
    %c0 = arith.constant 0 : index
    %0 = memref.load %arg1[%c0] : memref<2xf32, #tpu.memory_space<smem>>
    %c1 = arith.constant 1 : index
    %1 = memref.load %arg1[%c1] : memref<2xf32, #tpu.memory_space<smem>>
    %c0_0 = arith.constant 0 : index
    %c0_1 = arith.constant 0 : index
    %2 = vector.load %arg2[%c0_0, %c0_1] : memref<8x128xf32, #tpu.memory_space<vmem>>, vector<8x128xf32>
    %3 = vector.broadcast %0 : f32 to vector<8x128xf32>
    %4 = arith.mulf %2, %3 : vector<8x128xf32>
    %5 = vector.broadcast %1 : f32 to vector<8x128xf32>
    %6 = arith.addf %4, %5 : vector<8x128xf32>
    %cst = arith.constant 0.000000e+00 : f32
    %7 = vector.broadcast %cst : f32 to vector<8x128xf32>
    %8 = arith.subf %7, %6 : vector<8x128xf32>
    %9 = math.exp %8 : vector<8x128xf32>
    %cst_2 = arith.constant 1.000000e+00 : f32
    %10 = vector.broadcast %cst_2 : f32 to vector<8x128xf32>
    %11 = arith.addf %10, %9 : vector<8x128xf32>
    %12 = tpu.reciprocal %11 {approx = true} : vector<8x128xf32> -> vector<8x128xf32>
    %c0_3 = arith.constant 0 : index
    %c0_4 = arith.constant 0 : index
    %13 = vector.load %arg3[%c0_3, %c0_4] : memref<8x128xf32, #tpu.memory_space<vmem>>, vector<8x128xf32>
    tpu.vector_store %arg3[%c0_3, %c0_4], %12 {strides = array<i32>} : memref<8x128xf32, #tpu.memory_space<vmem>>, vector<8x128xf32>,
    return
  }
  func.func @transform_0(%arg0: i32) -> i32 {
    %c0_i32 = arith.constant 0 : i32
    %c0_i32_0 = arith.constant 0 : i32
    return %c0_i32 : i32
  }
  func.func @transform_1(%arg0: i32) -> (i32, i32) {
    %c0_i32 = arith.constant 0 : i32
    %c0_i32_0 = arith.constant 0 : i32
    return %arg0, %c0_i32 : i32, i32
  }
  func.func @transform_2(%arg0: i32) -> (i32, i32) {
    %c0_i32 = arith.constant 0 : i32
    %c0_i32_0 = arith.constant 0 : i32
    return %arg0, %c0_i32 : i32, i32
  }
}

</mosaic_0001>

<llo_original>
// kernel: logreg_forward.1
$region0: #{logreg_forward.1}
  #allocation0 [shape = 'u32[]', space=smem, size = 0x4, offset = 0x4, fixed_abs, tag = 'smem constant byte address 0x4 - core index']
  #allocation1 [shape = 'u32[144,128]{1,0:T(1,128)}', space=vmem, size = 0x12000, scoped, tag = 'internal scratch']
  %s0 = inlined_call_operand.vmem [shape: f32[2], index: 0, kind: input, shape index: {}]
  %s1 = inlined_call_operand.vmem [shape: f32[8,128], index: 1, kind: input, shape index: {}]
  %s2 = inlined_call_operand.vmem [shape: f32[8,128], index: 2, kind: output, shape index: {}]
  %s3 = sld [smem:[#allocation0]]
  $region22: #{logreg_forward.1} parent=0
    _
  %s5 = ssub.s32 1, %s3
  %s6 = scalar_select 0, %s5, %s3
  $region1: #{logreg_forward.1} parent=0
    #allocation2 [shape = 'u8[512]{0}', space=smem, size = 0x200, scoped, tag = 'input window, operand 0, single buffered']
    #allocation3 [shape = 's32[1]{0}', space=sflag, size = 0x4, scoped, tag = 'scoped memory for logreg_forward.1']
    %7 = vsyncpa [#allocation3], 0
    // Predicated region
    $region2: #{logreg_forward.1} parent=1 // pred_check
      _
    $region3: #{logreg_forward.1} parent=1 // pred_check_branch
      %9 = sbr.rel (0) target = $region5
    $region4: #{logreg_forward.1} parent=1 // pred_region
      %s11 = ssub.s32 16, 16
      %12 = vsyncadd [#allocation3], %s11
      %s14 = sshll.u32 %s0, 4
      %s15 = int_to_ptr.vmem [resolvable:$true] %s14
      %17 = dma.vmem_to_smem %s15, 16, [#allocation2], [#allocation3]
    $region5: #{logreg_forward.1} parent=1 // pred_fallthru
      _
    // Predicated region
    $region6: #{logreg_forward.1} parent=1 // pred_check
      _
    $region7: #{logreg_forward.1} parent=1 // pred_check_branch
      %19 = sbr.rel (0) target = $region9
    $region8: #{logreg_forward.1} parent=1 // pred_region
      _
    $region9: #{logreg_forward.1} parent=1 // pred_fallthru
      _
    // Predicated region
    $region10: #{logreg_forward.1} parent=1 // pred_check
      _
    $region11: #{logreg_forward.1} parent=1 // pred_check_branch
      %21 = sbr.rel (0) target = $region13
    $region12: #{logreg_forward.1} parent=1 // pred_region
      %22 = dma.done [#allocation3], 16
    $region13: #{logreg_forward.1} parent=1 // pred_fallthru
      _
    %23 = sfence
    %s24 = sld [smem:[#allocation2]]
    %s25 = sld [smem:[#allocation2 + $0x1]]
    %v26 = vld [vmem:[%s1] sm:$0xff]
    %v27 = vstv %s24
    %v28 = vmul.f32 %v26, %v27
    %v29 = vstv %s25
    %v30 = vadd.f32 %v28, %v29
    %v31 = vsub.f32 0.0, %v30
    %v32 = vmul.f32 %v31, 1.442695
    %v33 = vpow.pop %v32
    %v34 = vadd.f32 %v33, 1.0
    %v35 = vrcp.pop %v34
    %36 = vst [vmem:[%s2] sm:$0xff] %v35
    // Predicated region
    $region14: #{logreg_forward.1} parent=1 // pred_check
      _
    $region15: #{logreg_forward.1} parent=1 // pred_check_branch
      %38 = sbr.rel (0) target = $region17
    $region16: #{logreg_forward.1} parent=1 // pred_region
      _
    $region17: #{logreg_forward.1} parent=1 // pred_fallthru
      _
    // Predicated region
    $region18: #{logreg_forward.1} parent=1 // pred_check
      _
    $region19: #{logreg_forward.1} parent=1 // pred_check_branch
      %40 = sbr.rel (0) target = $region21
    $region20: #{logreg_forward.1} parent=1 // pred_region
      _
    $region21: #{logreg_forward.1} parent=1 // pred_fallthru
      _
    %41 = vsyncpa [#allocation3], 1

</llo_original>
